<compile_context>
chip_gen: v6e
topology: v6e:2x2x1
jax: 0.10.0
libtpu: 0.0.40
codegen_flags: <defaults>
</compile_context>

<pallas_src>
import jax
import jax.numpy as jnp
from jax import lax
from jax.experimental import pallas as pl
from jax.experimental.pallas import tpu as pltpu

EPS = 1e-5      # nn.BatchNorm2d default
LANE = 128      # TPU lane width
SUB = 8         # TPU sublane width


# ---------------------------------------------------------------------------
# helpers
# ---------------------------------------------------------------------------
def _round_up(x, m):
    return (x + m - 1) // m * m


def _pick_tk(k_pad, max_tk=512):
    for cand in (512, 384, 256, 128):
        if cand <= max_tk and k_pad % cand == 0:
            return cand
    return k_pad


def _vmem_limit(tile_bytes):
    # keep comfortably under v7x's 64 MiB physical VMEM; >= the v6e default of 32 MiB
    return int(min(48 << 20, max(32 << 20, 4 * tile_bytes)))


# ---------------------------------------------------------------------------
# Pallas kernels
# ---------------------------------------------------------------------------
def _matmul_stats_kernel(x_ref, w_ref, y_ref, stats_ref, acc_ref):
    """Tiled y = x @ w (MXU, f32 accumulate) + per-M-tile channel sum / sumsq."""
    k = pl.program_id(2)

    @pl.when(k == 0)
    def _():
        acc_ref[...] = jnp.zeros_like(acc_ref)

    acc_ref[...] += jnp.dot(x_ref[...], w_ref[...],
                            preferred_element_type=jnp.float32)

    @pl.when(k == pl.num_programs(2) - 1)
    def _():
        acc = acc_ref[...]
        y_ref[...] = acc.astype(y_ref.dtype)
        ssum = jnp.sum(acc, axis=0, keepdims=True)          # (1, TN)
        ssq = jnp.sum(acc * acc, axis=0, keepdims=True)     # (1, TN)
        rows = lax.broadcasted_iota(jnp.int32, stats_ref.shape, 0)
        stats_ref[...] = (jnp.where(rows == 0, ssum, 0.0)
                          + jnp.where(rows == 1, ssq, 0.0))


def _bn_relu_kernel(y_ref, s_ref, b_ref, o_ref):
    # o = relu(y * scale + shift)   (scale/shift pre-folded gamma/beta/mean/var)
    o_ref[...] = jnp.maximum(y_ref[...] * s_ref[...] + b_ref[...], 0.0)


def _bn_add_relu_kernel(y_ref, s_ref, b_ref, r_ref, rs_ref, rb_ref, o_ref):
    # o = relu( bn2(y) + bn_s(residual) )   (identity shortcut: rs=1, rb=0)
    main = y_ref[...] * s_ref[...] + b_ref[...]
    res = r_ref[...] * rs_ref[...] + rb_ref[...]
    o_ref[...] = jnp.maximum(main + res, 0.0)


# ---------------------------------------------------------------------------
# pallas_call wrappers
# ---------------------------------------------------------------------------
def matmul_stats(x_cols, w_mat, *, compute_dtype=jnp.float32, tm=256):
    """Tiled (im2col) conv matmul.  Returns (y_pre_bn_f32, per-tile partial stats).

    x_cols: (M, K)  w_mat: (K, Co).  Both are zero-padded so K, Co are multiples
    of 128 (lane-dense MXU operands / stores) and M is a multiple of TM.
    """
    M, K = x_cols.shape
    Kw, Co = w_mat.shape
    assert K == Kw
    Kp = _round_up(K, LANE)
    Np = _round_up(Co, LANE)
    tm = min(tm, _round_up(M, SUB))
    Mp = _round_up(M, tm)
    tn = 256 if Np % 256 == 0 else LANE      # 256-wide N tiles when channels allow (v6e/v7x MXU)
    tk = _pick_tk(Kp)
    mt, nt, kt = Mp // tm, Np // tn, Kp // tk

    xp = jnp.zeros((Mp, Kp), compute_dtype).at[:M, :K].set(x_cols.astype(compute_dtype))
    wp = jnp.zeros((Kp, Np), compute_dtype).at[:K, :Co].set(w_mat.astype(compute_dtype))

    esz = jnp.dtype(compute_dtype).itemsize
    tile_bytes = (2 * (tm * tk * esz + tk * tn * esz + tm * tn * 4 + SUB * tn * 4)
                  + tm * tn * 4)

    y, stats = pl.pallas_call(
        _matmul_stats_kernel,
        out_shape=(jax.ShapeDtypeStruct((Mp, Np), jnp.float32),
                   jax.ShapeDtypeStruct((mt * SUB, Np), jnp.float32)),
        grid_spec=pltpu.PrefetchScalarGridSpec(
            num_scalar_prefetch=0,
            grid=(mt, nt, kt),
            in_specs=[pl.BlockSpec((tm, tk), lambda i, j, k: (i, k)),
                      pl.BlockSpec((tk, tn), lambda i, j, k: (k, j))],
            out_specs=[pl.BlockSpec((tm, tn), lambda i, j, k: (i, j)),
                       pl.BlockSpec((SUB, tn), lambda i, j, k: (i, j))],
            scratch_shapes=[pltpu.VMEM((tm, tn), jnp.float32)]),
        compiler_params=pltpu.CompilerParams(
            dimension_semantics=("parallel", "parallel", "arbitrary"),
            vmem_limit_bytes=_vmem_limit(tile_bytes)),
    )(xp, wp)
    return y, stats


def bn_scale_shift(stats, gamma, beta, m_true):
    """Fold per-tile partial (sum, sumsq) + gamma/beta into lane-dense scale/shift rows."""
    Np = stats.shape[1]
    st = stats.reshape(-1, SUB, Np)
    s = st[:, 0, :].sum(axis=0)
    sq = st[:, 1, :].sum(axis=0)
    mean = s / m_true
    var = jnp.maximum(sq / m_true - mean * mean, 0.0)    # biased batch variance (train mode)
    g = jnp.zeros((Np,), jnp.float32).at[:gamma.shape[0]].set(gamma.astype(jnp.float32))
    b = jnp.zeros((Np,), jnp.float32).at[:beta.shape[0]].set(beta.astype(jnp.float32))
    scale = g * lax.rsqrt(var + EPS)
    shift = b - mean * scale
    return scale.reshape(1, Np), shift.reshape(1, Np)


def bn_apply(y, scale, shift, residual=None, res_scale=None, res_shift=None, *, tm=256):
    """Tiled BN-apply (+ optional residual-BN add) + ReLU epilogue, lane-dense output."""
    Mp, Np = y.shape
    tn = 256 if Np % 256 == 0 else LANE
    tm = min(tm, Mp)
    assert Mp % tm == 0 and Np % tn == 0
    mt, nt = Mp // tm, Np // tn

    tile_spec = pl.BlockSpec((tm, tn), lambda i, j: (i, j))
    row_spec = pl.BlockSpec((1, tn), lambda i, j: (0, j))

    if residual is None:
        kernel = _bn_relu_kernel
        args = (y, scale, shift)
        in_specs = [tile_spec, row_spec, row_spec]
    else:
        kernel = _bn_add_relu_kernel
        args = (y, scale, shift, residual, res_scale, res_shift)
        in_specs = [tile_spec, row_spec, row_spec, tile_spec, row_spec, row_spec]

    return pl.pallas_call(
        kernel,
        out_shape=jax.ShapeDtypeStruct((Mp, Np), jnp.float32),
        grid_spec=pltpu.PrefetchScalarGridSpec(
            num_scalar_prefetch=0,
            grid=(mt, nt),
            in_specs=in_specs,
            out_specs=tile_spec),
        compiler_params=pltpu.CompilerParams(
            dimension_semantics=("parallel", "parallel"),
            vmem_limit_bytes=_vmem_limit(8 * tm * tn * 4)),
    )(*args)


# ---------------------------------------------------------------------------
# im2col / weight reshaping (plain JAX plumbing)
# ---------------------------------------------------------------------------
def im2col(x_nhwc, ksize, stride, pad):
    N, H, W, C = x_nhwc.shape
    xp = jnp.pad(x_nhwc, ((0, 0), (pad, pad), (pad, pad), (0, 0)))
    Ho = (H + 2 * pad - ksize) // stride + 1
    Wo = (W + 2 * pad - ksize) // stride + 1
    cols = []
    for kh in range(ksize):
        for kw in range(ksize):
            cols.append(
                xp[:, kh:kh + stride * (Ho - 1) + 1:stride,
                      kw:kw + stride * (Wo - 1) + 1:stride, :])
    cols = jnp.concatenate(cols, axis=-1)            # (N, Ho, Wo, k*k*C), ordered (kh, kw, c)
    return cols.reshape(N * Ho * Wo, ksize * ksize * C), (N, Ho, Wo)


def conv_w_to_mat(w_oihw):
    # (Co, Ci, kh, kw) -> (kh*kw*Ci, Co), matching im2col's (kh, kw, c) ordering
    Co, Ci, kh, kw = w_oihw.shape
    return jnp.transpose(w_oihw, (2, 3, 1, 0)).reshape(kh * kw * Ci, Co)


# ---------------------------------------------------------------------------
# ResBlock forward
# ---------------------------------------------------------------------------
def resblock_forward(x_nchw, params, stride, *, compute_dtype=jnp.float32, tm=256):
    x = jnp.transpose(x_nchw, (0, 2, 3, 1)).astype(jnp.float32)   # NCHW -> NHWC
    N, H, W, _ = x.shape
    out_c, in_c = params["w1"].shape[0], params["w1"].shape[1]

    # ---- conv1 (3x3, stride, pad=1) + BN + ReLU  (tiled matmul pass + apply pass) ----
    cols1, (N, Ho, Wo) = im2col(x, 3, stride, 1)
    M = N * Ho * Wo
    y1, st1 = matmul_stats(cols1, conv_w_to_mat(params["w1"]),
                           compute_dtype=compute_dtype, tm=tm)
    sc1, sh1 = bn_scale_shift(st1, params["g1"], params["b1"], M)
    h1 = bn_apply(y1, sc1, sh1, tm=tm)
    h1_img = h1[:M, :out_c].reshape(N, Ho, Wo, out_c)

    # ---- conv2 (3x3, stride 1, pad=1) matmul + stats ----
    cols2, _ = im2col(h1_img, 3, 1, 1)
    y2, st2 = matmul_stats(cols2, conv_w_to_mat(params["w2"]),
                           compute_dtype=compute_dtype, tm=tm)
    sc2, sh2 = bn_scale_shift(st2, params["g2"], params["b2"], M)
    Mp, Np = y2.shape

    # ---- shortcut (projection conv1x1 + BN, or identity) ----
    if stride != 1 or in_c != out_c:
        xs = x[:, ::stride, ::stride, :].reshape(M, in_c)
        ys, sts = matmul_stats(xs, conv_w_to_mat(params["ws"]),
                               compute_dtype=compute_dtype, tm=tm)
        res_scale, res_shift = bn_scale_shift(sts, params["gs"], params["bs"], M)
        res = ys
    else:
        res = jnp.zeros((Mp, Np), jnp.float32).at[:M, :in_c].set(x.reshape(M, in_c))
        res_scale = jnp.ones((1, Np), jnp.float32)
        res_shift = jnp.zeros((1, Np), jnp.float32)

    # ---- BN2 + BN_shortcut + add + ReLU, fused tiled epilogue ----
    out = bn_apply(y2, sc2, sh2, residual=res,
                   res_scale=res_scale, res_shift=res_shift, tm=tm)
    out = out[:M, :out_c].reshape(N, Ho, Wo, out_c)
    return jnp.transpose(out, (0, 3, 1, 2))                       # NHWC -> NCHW


# ---------------------------------------------------------------------------
# Pure-JAX reference (lax.conv) for verification
# ---------------------------------------------------------------------------
def ref_forward(x, params, stride):
    dn = ("NCHW", "OIHW", "NCHW")

    def conv(x, w, s, pad):
        return lax.conv_general_dilated(x, w, (s, s), ((pad, pad), (pad, pad)),
                                        dimension_numbers=dn)

    def bn(x, g, b):
        mean = jnp.mean(x, axis=(0, 2, 3), keepdims=True)
        var = jnp.mean(jnp.square(x - mean), axis=(0, 2, 3), keepdims=True)
        return (x - mean) * lax.rsqrt(var + EPS) * g.reshape(1, -1, 1, 1) + b.reshape(1, -1, 1, 1)

    h = jax.nn.relu(bn(conv(x, params["w1"], stride, 1), params["g1"], params["b1"]))
    h = bn(conv(h, params["w2"], 1, 1), params["g2"], params["b2"])
    if "ws" in params:
        sc = bn(conv(x, params["ws"], stride, 0), params["gs"], params["bs"])
    else:
        sc = x
    return jax.nn.relu(h + sc)


# ---------------------------------------------------------------------------
if __name__ == "__main__":
    # --- config 1: projection shortcut (stride=2, channel change) ---
    key = jax.random.PRNGKey(0)
    N, in_c, out_c, H, W, stride = 2, 4, 8, 16, 16, 2
    ks = jax.random.split(key, 8)
    params = {
        "w1": 0.1 * jax.random.normal(ks[0], (out_c, in_c, 3, 3), jnp.float32),
        "g1": 1.0 + 0.1 * jax.random.normal(ks[1], (out_c,), jnp.float32),
        "b1": 0.1 * jax.random.normal(ks[2], (out_c,), jnp.float32),
        "w2": 0.1 * jax.random.normal(ks[3], (out_c, out_c, 3, 3), jnp.float32),
        "g2": 1.0 + 0.1 * jax.random.normal(ks[4], (out_c,), jnp.float32),
        "b2": 0.1 * jax.random.normal(ks[5], (out_c,), jnp.float32),
        "ws": 0.1 * jax.random.normal(ks[6], (out_c, in_c, 1, 1), jnp.float32),
        "gs": jnp.ones((out_c,), jnp.float32),
        "bs": jnp.zeros((out_c,), jnp.float32),
    }
    x = jax.random.normal(jax.random.PRNGKey(1), (N, in_c, H, W), jnp.float32)

    out = resblock_forward(x, params, stride, compute_dtype=jnp.float32)
    jax.block_until_ready(out)
    ref = ref_forward(x, params, stride)
    assert out.shape == ref.shape == (N, out_c, H // stride, W // stride)
    assert jnp.allclose(out, ref, atol=1e-4, rtol=1e-4), float(jnp.max(jnp.abs(out - ref)))

    # bf16 MXU-operand path (production dtype), f32 accumulation -> loose tolerance
    out_bf16 = resblock_forward(x, params, stride, compute_dtype=jnp.bfloat16)
    jax.block_until_ready(out_bf16)
    assert float(jnp.max(jnp.abs(out_bf16 - ref))) < 0.3

    # --- config 2: identity shortcut (stride=1, in_c == out_c) ---
    c2 = 8
    ks2 = jax.random.split(jax.random.PRNGKey(2), 6)
    params2 = {
        "w1": 0.1 * jax.random.normal(ks2[0], (c2, c2, 3, 3), jnp.float32),
        "g1": 1.0 + 0.1 * jax.random.normal(ks2[1], (c2,), jnp.float32),
        "b1": 0.1 * jax.random.normal(ks2[2], (c2,), jnp.float32),
        "w2": 0.1 * jax.random.normal(ks2[3], (c2, c2, 3, 3), jnp.float32),
        "g2": 1.0 + 0.1 * jax.random.normal(ks2[4], (c2,), jnp.float32),
        "b2": 0.1 * jax.random.normal(ks2[5], (c2,), jnp.float32),
    }
    x2 = jax.random.normal(jax.random.PRNGKey(3), (2, c2, 8, 8), jnp.float32)
    out2 = resblock_forward(x2, params2, 1, compute_dtype=jnp.float32)
    jax.block_until_ready(out2)
    ref2 = ref_forward(x2, params2, 1)
    assert out2.shape == ref2.shape == (2, c2, 8, 8)
    assert jnp.allclose(out2, ref2, atol=1e-4, rtol=1e-4), float(jnp.max(jnp.abs(out2 - ref2)))

    print("KERNEL_OK")
</pallas_src>

<mosaic_0001>
module attributes {stable_mosaic.version = 11 : i64} {
  func.func @_matmul_stats_kernel(%arg0: i32, %arg1: i32, %arg2: i32, %arg3: memref<128x128xf32, #tpu.memory_space<vmem>>, %arg4: memref<128x128xf32, #tpu.memory_space<vmem>>, %arg5: memref<128x128xf32, #tpu.memory_space<vmem>>, %arg6: memref<8x128xf32, #tpu.memory_space<vmem>>, %arg7: memref<128x128xf32, #tpu.memory_space<vmem>>) attributes {dimension_semantics = [#tpu.dimension_semantics<parallel>, #tpu.dimension_semantics<parallel>, #tpu.dimension_semantics<arbitrary>], iteration_bounds = array<i64: 1, 1, 1>, scalar_prefetch = 0 : i64, scratch_operands = 1 : i64, tpu.core_type = #tpu.core_type<tc>, window_params = [{transform_indices = @transform_0, window_bounds = array<i64: 128, 128>}, {transform_indices = @transform_1, window_bounds = array<i64: 128, 128>}, {transform_indices = @transform_2, window_bounds = array<i64: 128, 128>}, {transform_indices = @transform_3, window_bounds = array<i64: 8, 128>}]} {
    %c0_i32 = arith.constant 0 : i32
    %0 = arith.cmpi eq, %arg2, %c0_i32 : i32
    %1 = arith.extui %0 : i1 to i32
    %c0_i32_0 = arith.constant 0 : i32
    %2 = arith.cmpi ne, %1, %c0_i32_0 : i32
    scf.if %2 {
      %cst_10 = arith.constant 0.000000e+00 : f32
      %12 = vector.broadcast %cst_10 : f32 to vector<128x128xf32>
      %c0_11 = arith.constant 0 : index
      %c0_12 = arith.constant 0 : index
      %13 = vector.load %arg7[%c0_11, %c0_12] : memref<128x128xf32, #tpu.memory_space<vmem>>, vector<128x128xf32>
      tpu.vector_store %arg7[%c0_11, %c0_12], %12 {strides = array<i32>} : memref<128x128xf32, #tpu.memory_space<vmem>>, vector<128x128xf32>,
    } else {
    }
    %c0 = arith.constant 0 : index
    %c0_1 = arith.constant 0 : index
    %3 = vector.load %arg7[%c0, %c0_1] : memref<128x128xf32, #tpu.memory_space<vmem>>, vector<128x128xf32>
    %c0_2 = arith.constant 0 : index
    %c0_3 = arith.constant 0 : index
    %4 = vector.load %arg3[%c0_2, %c0_3] : memref<128x128xf32, #tpu.memory_space<vmem>>, vector<128x128xf32>
    %c0_4 = arith.constant 0 : index
    %c0_5 = arith.constant 0 : index
    %5 = vector.load %arg4[%c0_4, %c0_5] : memref<128x128xf32, #tpu.memory_space<vmem>>, vector<128x128xf32>
    %cst = arith.constant dense<0.000000e+00> : vector<128x128xf32>
    %6 = tpu.matmul %4, %5, %cst {dimension_numbers = #tpu.dot_dimension_numbers<[1], [0], [0], [1], [0, 0, 1, 1], [], []>} : vector<128x128xf32>, vector<128x128xf32>, vector<128x128xf32> -> vector<128x128xf32>
    %7 = arith.addf %3, %6 : vector<128x128xf32>
    %c0_6 = arith.constant 0 : index
    %c0_7 = arith.constant 0 : index
    %8 = vector.load %arg7[%c0_6, %c0_7] : memref<128x128xf32, #tpu.memory_space<vmem>>, vector<128x128xf32>
    tpu.vector_store %arg7[%c0_6, %c0_7], %7 {strides = array<i32>} : memref<128x128xf32, #tpu.memory_space<vmem>>, vector<128x128xf32>,
    %c0_i32_8 = arith.constant 0 : i32
    %9 = arith.cmpi eq, %arg2, %c0_i32_8 : i32
    %10 = arith.extui %9 : i1 to i32
    %c0_i32_9 = arith.constant 0 : i32
    %11 = arith.cmpi ne, %10, %c0_i32_9 : i32
    scf.if %11 {
      %c0_10 = arith.constant 0 : index
      %c0_11 = arith.constant 0 : index
      %12 = vector.load %arg7[%c0_10, %c0_11] : memref<128x128xf32, #tpu.memory_space<vmem>>, vector<128x128xf32>
      %c0_12 = arith.constant 0 : index
      %c0_13 = arith.constant 0 : index
      %13 = vector.load %arg5[%c0_12, %c0_13] : memref<128x128xf32, #tpu.memory_space<vmem>>, vector<128x128xf32>
      tpu.vector_store %arg5[%c0_12, %c0_13], %12 {strides = array<i32>} : memref<128x128xf32, #tpu.memory_space<vmem>>, vector<128x128xf32>,
      %cst_14 = arith.constant dense<0.000000e+00> : vector<128xf32>
      %14 = vector.multi_reduction <add>, %12, %cst_14 [0] : vector<128x128xf32> to vector<128xf32>
      %15 = vector.shape_cast %14 : vector<128xf32> to vector<1x128xf32>
      %16 = arith.mulf %12, %12 : vector<128x128xf32>
      %cst_15 = arith.constant dense<0.000000e+00> : vector<128xf32>
      %17 = vector.multi_reduction <add>, %16, %cst_15 [0] : vector<128x128xf32> to vector<128xf32>
      %18 = vector.shape_cast %17 : vector<128xf32> to vector<1x128xf32>
      %19 = tpu.iota {dimensions = array<i32: 0>} : vector<8x128xi32>
      %c0_i32_16 = arith.constant 0 : i32
      %20 = vector.broadcast %c0_i32_16 : i32 to vector<8x128xi32>
      %21 = arith.cmpi eq, %19, %20 : vector<8x128xi32>
      %cst_17 = arith.constant 0.000000e+00 : f32
      %22 = vector.shape_cast %15 : vector<1x128xf32> to vector<1x128xf32>
      %23 = vector.broadcast %22 : vector<1x128xf32> to vector<8x128xf32>
      %24 = vector.broadcast %cst_17 : f32 to vector<8x128xf32>
      %25 = arith.select %21, %23, %24 : vector<8x128xi1>, vector<8x128xf32>
      %c1_i32 = arith.constant 1 : i32
      %26 = vector.broadcast %c1_i32 : i32 to vector<8x128xi32>
      %27 = arith.cmpi eq, %19, %26 : vector<8x128xi32>
      %cst_18 = arith.constant 0.000000e+00 : f32
      %28 = vector.shape_cast %18 : vector<1x128xf32> to vector<1x128xf32>
      %29 = vector.broadcast %28 : vector<1x128xf32> to vector<8x128xf32>
      %30 = vector.broadcast %cst_18 : f32 to vector<8x128xf32>
      %31 = arith.select %27, %29, %30 : vector<8x128xi1>, vector<8x128xf32>
      %32 = arith.addf %25, %31 : vector<8x128xf32>
      %c0_19 = arith.constant 0 : index
      %c0_20 = arith.constant 0 : index
      %33 = vector.load %arg6[%c0_19, %c0_20] : memref<8x128xf32, #tpu.memory_space<vmem>>, vector<8x128xf32>
      tpu.vector_store %arg6[%c0_19, %c0_20], %32 {strides = array<i32>} : memref<8x128xf32, #tpu.memory_space<vmem>>, vector<8x128xf32>,
    } else {
    }
    return
  }
  func.func @transform_0(%arg0: i32, %arg1: i32, %arg2: i32) -> (i32, i32) {
    %c0_i32 = arith.constant 0 : i32
    return %arg0, %arg2 : i32, i32
  }
  func.func @transform_1(%arg0: i32, %arg1: i32, %arg2: i32) -> (i32, i32) {
    %c0_i32 = arith.constant 0 : i32
    return %arg2, %arg1 : i32, i32
  }
  func.func @transform_2(%arg0: i32, %arg1: i32, %arg2: i32) -> (i32, i32) {
    %c0_i32 = arith.constant 0 : i32
    return %arg0, %arg1 : i32, i32
  }
  func.func @transform_3(%arg0: i32, %arg1: i32, %arg2: i32) -> (i32, i32) {
    %c0_i32 = arith.constant 0 : i32
    return %arg0, %arg1 : i32, i32
  }
}

</mosaic_0001>

<llo_original>
// kernel: tpu_custom_call.1
$region0: #{tpu_custom_call.1}
  #allocation0 [shape = 'u32[]', space=smem, size = 0x4, offset = 0x4, fixed_abs, tag = 'smem constant byte address 0x4 - core index']
  #allocation1 [shape = 'u32[144,128]{1,0:T(1,128)}', space=vmem, size = 0x12000, scoped, tag = 'internal scratch']
  #allocation2 [shape = 'f32[128,128]{1,0:T(8,128)}', space=vmem, size = 0x10000, scoped, tag = 'scratch operand']
  %s0 = inlined_call_operand.hbm [shape: f32[128,128], index: 0, kind: input, shape index: {}]
  %s1 = inlined_call_operand.hbm [shape: f32[128,128], index: 1, kind: input, shape index: {}]
  %s2 = inlined_call_operand.hbm [shape: f32[128,128], index: 2, kind: output, shape index: {0}]
  %s3 = inlined_call_operand.hbm [shape: f32[8,128], index: 3, kind: output, shape index: {1}]
  %4 = xla_tuple %s2, %s3
  %s5 = sld [smem:[#allocation0]]
  $region42: #{tpu_custom_call.1} parent=0
    _
  %s7 = ssub.s32 1, %s5
  %s8 = scalar_select 0, %s7, %s5
  $region1: #{tpu_custom_call.1} parent=0
    #allocation3 [shape = 'u8[65536]{0}', space=vmem, size = 0x10000, scoped, tag = 'input window, operand 0, single buffered']
    #allocation4 [shape = 's32[1]{0}', space=sflag, size = 0x4, scoped, tag = 'scoped memory for tpu_custom_call.1']
    #allocation5 [shape = 's32[1]{0}', space=sflag, size = 0x4, scoped, tag = 'scoped memory for tpu_custom_call.1']
    #allocation6 [shape = 'u8[65536]{0}', space=vmem, size = 0x10000, scoped, tag = 'input window, operand 1, single buffered']
    #allocation7 [shape = 's32[1]{0}', space=sflag, size = 0x4, scoped, tag = 'scoped memory for tpu_custom_call.1']
    #allocation8 [shape = 'u8[65536]{0}', space=vmem, size = 0x10000, scoped, tag = 'output window, operand 0, single buffered']
    #allocation9 [shape = 'u8[4096]{0}', space=vmem, size = 0x1000, scoped, tag = 'output window, operand 1, single buffered']
    #allocation10 [shape = 's32[1]{0}', space=sflag, size = 0x4, scoped, tag = 'scoped memory for tpu_custom_call.1']
    %9 = vsyncpa [#allocation4], 0
    %10 = vsyncpa [#allocation7], 0
    %11 = vsyncpa [#allocation5], 0
    %12 = vsyncpa [#allocation10], 0
    // Predicated region
    $region2: #{tpu_custom_call.1} parent=1 // pred_check
      _
    $region3: #{tpu_custom_call.1} parent=1 // pred_check_branch
      %14 = sbr.rel (0) target = $region5
    $region4: #{tpu_custom_call.1} parent=1 // pred_region
      %s16 = ssub.s32 2048, 2048
      %17 = vsyncadd [#allocation4], %s16
      %s18 = sshll.u32 [#allocation3], 4
      %s19 = int_to_ptr.vmem [resolvable:$true] %s18
      %24 = dma.hbm_to_vmem [thread:$0]  %s0, 2048, %s19, [#allocation4], 128, 128, 8
    $region5: #{tpu_custom_call.1} parent=1 // pred_fallthru
      _
    // Predicated region
    $region6: #{tpu_custom_call.1} parent=1 // pred_check
      _
    $region7: #{tpu_custom_call.1} parent=1 // pred_check_branch
      %26 = sbr.rel (0) target = $region9
    $region8: #{tpu_custom_call.1} parent=1 // pred_region
      %s28 = ssub.s32 2048, 2048
      %29 = vsyncadd [#allocation7], %s28
      %s30 = sshll.u32 [#allocation6], 4
      %s31 = int_to_ptr.vmem [resolvable:$true] %s30
      %36 = dma.hbm_to_vmem [thread:$0]  %s1, 2048, %s31, [#allocation7], 128, 128, 8
    $region9: #{tpu_custom_call.1} parent=1 // pred_fallthru
      _
    // Predicated region
    $region10: #{tpu_custom_call.1} parent=1 // pred_check
      _
    $region11: #{tpu_custom_call.1} parent=1 // pred_check_branch
      %38 = sbr.rel (0) target = $region13
    $region12: #{tpu_custom_call.1} parent=1 // pred_region
      %39 = dma.done [#allocation4], 2048
    $region13: #{tpu_custom_call.1} parent=1 // pred_fallthru
      _
    // Predicated region
    $region14: #{tpu_custom_call.1} parent=1 // pred_check
      _
    $region15: #{tpu_custom_call.1} parent=1 // pred_check_branch
      %41 = sbr.rel (0) target = $region17
    $region16: #{tpu_custom_call.1} parent=1 // pred_region
      %42 = dma.done [#allocation7], 2048
    $region17: #{tpu_custom_call.1} parent=1 // pred_fallthru
      _
    %p43 = scmp.eq.s32.totalorder 0, 0
    // Predicated region
    $region18: #{tpu_custom_call.1} parent=1 // pred_check
      %p44 = pneg %p43
    $region19: #{tpu_custom_call.1} parent=1 // pred_check_branch
      %46 = sbr.rel (%p44) target = $region21
    $region20: #{tpu_custom_call.1} parent=1 // pred_region
      %47 = vst [vmem:[#allocation2] sm:$0xff] 0.0
      %48 = vst [vmem:[#allocation2 + $0x8] sm:$0xff] 0.0
      %49 = vst [vmem:[#allocation2 + $0x10] sm:$0xff] 0.0
      %50 = vst [vmem:[#allocation2 + $0x18] sm:$0xff] 0.0
      %51 = vst [vmem:[#allocation2 + $0x20] sm:$0xff] 0.0
      %52 = vst [vmem:[#allocation2 + $0x28] sm:$0xff] 0.0
      %53 = vst [vmem:[#allocation2 + $0x30] sm:$0xff] 0.0
      %54 = vst [vmem:[#allocation2 + $0x38] sm:$0xff] 0.0
      %55 = vst [vmem:[#allocation2 + $0x40] sm:$0xff] 0.0
      %56 = vst [vmem:[#allocation2 + $0x48] sm:$0xff] 0.0
      %57 = vst [vmem:[#allocation2 + $0x50] sm:$0xff] 0.0
      %58 = vst [vmem:[#allocation2 + $0x58] sm:$0xff] 0.0
      %59 = vst [vmem:[#allocation2 + $0x60] sm:$0xff] 0.0
      %60 = vst [vmem:[#allocation2 + $0x68] sm:$0xff] 0.0
      %61 = vst [vmem:[#allocation2 + $0x70] sm:$0xff] 0.0
      %62 = vst [vmem:[#allocation2 + $0x78] sm:$0xff] 0.0
    $region21: #{tpu_custom_call.1} parent=1 // pred_fallthru
      _
    %v63 = vld [vmem:[#allocation2] sm:$0xff]
    %v64 = vld [vmem:[#allocation2 + $0x8] sm:$0xff]
    %v65 = vld [vmem:[#allocation2 + $0x10] sm:$0xff]
    %v66 = vld [vmem:[#allocation2 + $0x18] sm:$0xff]
    %v67 = vld [vmem:[#allocation2 + $0x20] sm:$0xff]
    %v68 = vld [vmem:[#allocation2 + $0x28] sm:$0xff]
    %v69 = vld [vmem:[#allocation2 + $0x30] sm:$0xff]
    %v70 = vld [vmem:[#allocation2 + $0x38] sm:$0xff]
    %v71 = vld [vmem:[#allocation2 + $0x40] sm:$0xff]
    %v72 = vld [vmem:[#allocation2 + $0x48] sm:$0xff]
    %v73 = vld [vmem:[#allocation2 + $0x50] sm:$0xff]
    %v74 = vld [vmem:[#allocation2 + $0x58] sm:$0xff]
    %v75 = vld [vmem:[#allocation2 + $0x60] sm:$0xff]
    %v76 = vld [vmem:[#allocation2 + $0x68] sm:$0xff]
    %v77 = vld [vmem:[#allocation2 + $0x70] sm:$0xff]
    %v78 = vld [vmem:[#allocation2 + $0x78] sm:$0xff]
    %v79 = vld [vmem:[#allocation3] sm:$0xff]
    %v80 = vld [vmem:[#allocation3 + $0x8] sm:$0xff]
    %v81 = vld [vmem:[#allocation3 + $0x10] sm:$0xff]
    %v82 = vld [vmem:[#allocation3 + $0x18] sm:$0xff]
    %v83 = vld [vmem:[#allocation3 + $0x20] sm:$0xff]
    %v84 = vld [vmem:[#allocation3 + $0x28] sm:$0xff]
    %v85 = vld [vmem:[#allocation3 + $0x30] sm:$0xff]
    %v86 = vld [vmem:[#allocation3 + $0x38] sm:$0xff]
    %v87 = vld [vmem:[#allocation3 + $0x40] sm:$0xff]
    %v88 = vld [vmem:[#allocation3 + $0x48] sm:$0xff]
    %v89 = vld [vmem:[#allocation3 + $0x50] sm:$0xff]
    %v90 = vld [vmem:[#allocation3 + $0x58] sm:$0xff]
    %v91 = vld [vmem:[#allocation3 + $0x60] sm:$0xff]
    %v92 = vld [vmem:[#allocation3 + $0x68] sm:$0xff]
    %v93 = vld [vmem:[#allocation3 + $0x70] sm:$0xff]
    %v94 = vld [vmem:[#allocation3 + $0x78] sm:$0xff]
    %v95 = vld [vmem:[#allocation6] sm:$0xff]
    %v96 = vld [vmem:[#allocation6 + $0x8] sm:$0xff]
    %v97 = vld [vmem:[#allocation6 + $0x10] sm:$0xff]
    %v98 = vld [vmem:[#allocation6 + $0x18] sm:$0xff]
    %v99 = vld [vmem:[#allocation6 + $0x20] sm:$0xff]
    %v100 = vld [vmem:[#allocation6 + $0x28] sm:$0xff]
    %v101 = vld [vmem:[#allocation6 + $0x30] sm:$0xff]
    %v102 = vld [vmem:[#allocation6 + $0x38] sm:$0xff]
    %v103 = vld [vmem:[#allocation6 + $0x40] sm:$0xff]
    %v104 = vld [vmem:[#allocation6 + $0x48] sm:$0xff]
    %v105 = vld [vmem:[#allocation6 + $0x50] sm:$0xff]
    %v106 = vld [vmem:[#allocation6 + $0x58] sm:$0xff]
    %v107 = vld [vmem:[#allocation6 + $0x60] sm:$0xff]
    %v108 = vld [vmem:[#allocation6 + $0x68] sm:$0xff]
    %v109 = vld [vmem:[#allocation6 + $0x70] sm:$0xff]
    %v110 = vld [vmem:[#allocation6 + $0x78] sm:$0xff]
    %111 = vmatprep.subr.mxu0 0.0
    %112 = vmatpush1.msra.mxu0 %v110
    %113 = vmatprep.subr.mxu0 0.0
    %114 = vmatpush1.msra.mxu0 %v109
    %115 = vmatprep.subr.mxu0 0.0
    %116 = vmatpush1.msra.mxu0 %v108
    %117 = vmatprep.subr.mxu0 0.0
    %118 = vmatpush1.msra.mxu0 %v107
    %119 = vmatprep.subr.mxu0 0.0
    %120 = vmatpush1.msra.mxu0 %v106
    %121 = vmatprep.subr.mxu0 0.0
    %122 = vmatpush1.msra.mxu0 %v105
    %123 = vmatprep.subr.mxu0 0.0
    %124 = vmatpush1.msra.mxu0 %v104
    %125 = vmatprep.subr.mxu0 0.0
    %126 = vmatpush1.msra.mxu0 %v103
    %127 = vmatprep.subr.mxu0 0.0
    %128 = vmatpush1.msra.mxu0 %v102
    %129 = vmatprep.subr.mxu0 0.0
    %130 = vmatpush1.msra.mxu0 %v101
    %131 = vmatprep.subr.mxu0 0.0
    %132 = vmatpush1.msra.mxu0 %v100
    %133 = vmatprep.subr.mxu0 0.0
    %134 = vmatpush1.msra.mxu0 %v99
    %135 = vmatprep.subr.mxu0 0.0
    %136 = vmatpush1.msra.mxu0 %v98
    %137 = vmatprep.subr.mxu0 0.0
    %138 = vmatpush1.msra.mxu0 %v97
    %139 = vmatprep.subr.mxu0 0.0
    %140 = vmatpush1.msra.mxu0 %v96
    %141 = vmatprep.subr.mxu0 0.0
    %142 = vmatpush1.msra.mxu0 %v95
    %143 = vmatprep.subr.mxu0 0.0
    %144 = vmatpush2.msra.mxu0 0.0
    %145 = vmatprep.subr.mxu0 0.0
    %146 = vmatpush2.msra.mxu0 0.0
    %147 = vmatprep.subr.mxu0 0.0
    %148 = vmatpush2.msra.mxu0 0.0
    %149 = vmatprep.subr.mxu0 0.0
    %150 = vmatpush2.msra.mxu0 0.0
    %151 = vmatprep.subr.mxu0 0.0
    %152 = vmatpush2.msra.mxu0 0.0
    %153 = vmatprep.subr.mxu0 0.0
    %154 = vmatpush2.msra.mxu0 0.0
    %155 = vmatprep.subr.mxu0 0.0
    %156 = vmatpush2.msra.mxu0 0.0
    %157 = vmatprep.subr.mxu0 0.0
    %158 = vmatpush2.msra.mxu0 0.0
    %159 = vmatprep.subr.mxu0 0.0
    %160 = vmatpush2.msra.mxu0 0.0
    %161 = vmatprep.subr.mxu0 0.0
    %162 = vmatpush2.msra.mxu0 0.0
    %163 = vmatprep.subr.mxu0 0.0
    %164 = vmatpush2.msra.mxu0 0.0
    %165 = vmatprep.subr.mxu0 0.0
    %166 = vmatpush2.msra.mxu0 0.0
    %167 = vmatprep.subr.mxu0 0.0
    %168 = vmatpush2.msra.mxu0 0.0
    %169 = vmatprep.subr.mxu0 0.0
    %170 = vmatpush2.msra.mxu0 0.0
    %171 = vmatprep.subr.mxu0 0.0
    %172 = vmatpush2.msra.mxu0 0.0
    %173 = vmatprep.subr.mxu0 0.0
    %174 = vmatpush2.msra.mxu0 0.0
    %175 = vmatprep.mubr.f32.mxu0 0.0
    %176 = vmatmul.mubr.f32.gmra.mxu0 %v79
    %v177 = vpop.f32.mrf.mxu0
    %v178 = vadd.f32 0.0, %v177
    %v179 = vpop.f32.mrf.mxu0
    %180 = vmatprep.mubr.f32.mxu0 0.0
    %181 = vmatmul.mubr.f32.gmra.mxu0 %v80
    %v182 = vpop.f32.mrf.mxu0
    %v183 = vadd.f32 0.0, %v182
    %v184 = vpop.f32.mrf.mxu0
    %185 = vmatprep.mubr.f32.mxu0 0.0
    %186 = vmatmul.mubr.f32.gmra.mxu0 %v81
    %v187 = vpop.f32.mrf.mxu0
    %v188 = vadd.f32 0.0, %v187
    %v189 = vpop.f32.mrf.mxu0
    %190 = vmatprep.mubr.f32.mxu0 0.0
    %191 = vmatmul.mubr.f32.gmra.mxu0 %v82
    %v192 = vpop.f32.mrf.mxu0
    %v193 = vadd.f32 0.0, %v192
    %v194 = vpop.f32.mrf.mxu0
    %195 = vmatprep.mubr.f32.mxu0 0.0
    %196 = vmatmul.mubr.f32.gmra.mxu0 %v83
    %v197 = vpop.f32.mrf.mxu0
    %v198 = vadd.f32 0.0, %v197
    %v199 = vpop.f32.mrf.mxu0
    %200 = vmatprep.mubr.f32.mxu0 0.0
    %201 = vmatmul.mubr.f32.gmra.mxu0 %v84
    %v202 = vpop.f32.mrf.mxu0
    %v203 = vadd.f32 0.0, %v202
    %v204 = vpop.f32.mrf.mxu0
    %205 = vmatprep.mubr.f32.mxu0 0.0
    %206 = vmatmul.mubr.f32.gmra.mxu0 %v85
    %v207 = vpop.f32.mrf.mxu0
    %v208 = vadd.f32 0.0, %v207
    %v209 = vpop.f32.mrf.mxu0
    %210 = vmatprep.mubr.f32.mxu0 0.0
    %211 = vmatmul.mubr.f32.gmra.mxu0 %v86
    %v212 = vpop.f32.mrf.mxu0
    %v213 = vadd.f32 0.0, %v212
    %v214 = vpop.f32.mrf.mxu0
    %215 = vmatprep.mubr.f32.mxu0 0.0
    %216 = vmatmul.mubr.f32.gmra.mxu0 %v87
    %v217 = vpop.f32.mrf.mxu0
    %v218 = vadd.f32 0.0, %v217
    %v219 = vpop.f32.mrf.mxu0
    %220 = vmatprep.mubr.f32.mxu0 0.0
    %221 = vmatmul.mubr.f32.gmra.mxu0 %v88
    %v222 = vpop.f32.mrf.mxu0
    %v223 = vadd.f32 0.0, %v222
    %v224 = vpop.f32.mrf.mxu0
    %225 = vmatprep.mubr.f32.mxu0 0.0
    %226 = vmatmul.mubr.f32.gmra.mxu0 %v89
    %v227 = vpop.f32.mrf.mxu0
    %v228 = vadd.f32 0.0, %v227
    %v229 = vpop.f32.mrf.mxu0
    %230 = vmatprep.mubr.f32.mxu0 0.0
    %231 = vmatmul.mubr.f32.gmra.mxu0 %v90
    %v232 = vpop.f32.mrf.mxu0
    %v233 = vadd.f32 0.0, %v232
    %v234 = vpop.f32.mrf.mxu0
    %235 = vmatprep.mubr.f32.mxu0 0.0
    %236 = vmatmul.mubr.f32.gmra.mxu0 %v91
    %v237 = vpop.f32.mrf.mxu0
    %v238 = vadd.f32 0.0, %v237
    %v239 = vpop.f32.mrf.mxu0
    %240 = vmatprep.mubr.f32.mxu0 0.0
    %241 = vmatmul.mubr.f32.gmra.mxu0 %v92
    %v242 = vpop.f32.mrf.mxu0
    %v243 = vadd.f32 0.0, %v242
    %v244 = vpop.f32.mrf.mxu0
    %245 = vmatprep.mubr.f32.mxu0 0.0
    %246 = vmatmul.mubr.f32.gmra.mxu0 %v93
    %v247 = vpop.f32.mrf.mxu0
    %v248 = vadd.f32 0.0, %v247
    %v249 = vpop.f32.mrf.mxu0
    %250 = vmatprep.mubr.f32.mxu0 0.0
    %251 = vmatmul.mubr.f32.gmra.mxu0 %v94
    %v252 = vpop.f32.mrf.mxu0
    %v253 = vadd.f32 0.0, %v252
    %v254 = vpop.f32.mrf.mxu0
    %255 = vdwg.mxu0
    %v256 = vadd.f32 %v63, %v178
    %v257 = vadd.f32 %v64, %v183
    %v258 = vadd.f32 %v65, %v188
    %v259 = vadd.f32 %v66, %v193
    %v260 = vadd.f32 %v67, %v198
    %v261 = vadd.f32 %v68, %v203
    %v262 = vadd.f32 %v69, %v208
    %v263 = vadd.f32 %v70, %v213
    %v264 = vadd.f32 %v71, %v218
    %v265 = vadd.f32 %v72, %v223
    %v266 = vadd.f32 %v73, %v228
    %v267 = vadd.f32 %v74, %v233
    %v268 = vadd.f32 %v75, %v238
    %v269 = vadd.f32 %v76, %v243
    %v270 = vadd.f32 %v77, %v248
    %v271 = vadd.f32 %v78, %v253
    %272 = vst [vmem:[#allocation2] sm:$0xff] %v256
    %273 = vst [vmem:[#allocation2 + $0x8] sm:$0xff] %v257
    %274 = vst [vmem:[#allocation2 + $0x10] sm:$0xff] %v258
    %275 = vst [vmem:[#allocation2 + $0x18] sm:$0xff] %v259
    %276 = vst [vmem:[#allocation2 + $0x20] sm:$0xff] %v260
    %277 = vst [vmem:[#allocation2 + $0x28] sm:$0xff] %v261
    %278 = vst [vmem:[#allocation2 + $0x30] sm:$0xff] %v262
    %279 = vst [vmem:[#allocation2 + $0x38] sm:$0xff] %v263
    %280 = vst [vmem:[#allocation2 + $0x40] sm:$0xff] %v264
    %281 = vst [vmem:[#allocation2 + $0x48] sm:$0xff] %v265
    %282 = vst [vmem:[#allocation2 + $0x50] sm:$0xff] %v266
    %283 = vst [vmem:[#allocation2 + $0x58] sm:$0xff] %v267
    %284 = vst [vmem:[#allocation2 + $0x60] sm:$0xff] %v268
    %285 = vst [vmem:[#allocation2 + $0x68] sm:$0xff] %v269
    %286 = vst [vmem:[#allocation2 + $0x70] sm:$0xff] %v270
    %287 = vst [vmem:[#allocation2 + $0x78] sm:$0xff] %v271
    // Predicated region
    $region22: #{tpu_custom_call.1} parent=1 // pred_check
      %p288 = pneg %p43
    $region23: #{tpu_custom_call.1} parent=1 // pred_check_branch
      %290 = sbr.rel (%p288) target = $region25
    $region24: #{tpu_custom_call.1} parent=1 // pred_region
      %v291 = vld [vmem:[#allocation2] sm:$0xff]
      %v292 = vld [vmem:[#allocation2 + $0x8] sm:$0xff]
      %v293 = vld [vmem:[#allocation2 + $0x10] sm:$0xff]
      %v294 = vld [vmem:[#allocation2 + $0x18] sm:$0xff]
      %v295 = vld [vmem:[#allocation2 + $0x20] sm:$0xff]
      %v296 = vld [vmem:[#allocation2 + $0x28] sm:$0xff]
      %v297 = vld [vmem:[#allocation2 + $0x30] sm:$0xff]
      %v298 = vld [vmem:[#allocation2 + $0x38] sm:$0xff]
      %v299 = vld [vmem:[#allocation2 + $0x40] sm:$0xff]
      %v300 = vld [vmem:[#allocation2 + $0x48] sm:$0xff]
      %v301 = vld [vmem:[#allocation2 + $0x50] sm:$0xff]
      %v302 = vld [vmem:[#allocation2 + $0x58] sm:$0xff]
      %v303 = vld [vmem:[#allocation2 + $0x60] sm:$0xff]
      %v304 = vld [vmem:[#allocation2 + $0x68] sm:$0xff]
      %v305 = vld [vmem:[#allocation2 + $0x70] sm:$0xff]
      %v306 = vld [vmem:[#allocation2 + $0x78] sm:$0xff]
      %307 = vst [vmem:[#allocation8] sm:$0xff] %v291
      %308 = vst [vmem:[#allocation8 + $0x8] sm:$0xff] %v292
      %309 = vst [vmem:[#allocation8 + $0x10] sm:$0xff] %v293
      %310 = vst [vmem:[#allocation8 + $0x18] sm:$0xff] %v294
      %311 = vst [vmem:[#allocation8 + $0x20] sm:$0xff] %v295
      %312 = vst [vmem:[#allocation8 + $0x28] sm:$0xff] %v296
      %313 = vst [vmem:[#allocation8 + $0x30] sm:$0xff] %v297
      %314 = vst [vmem:[#allocation8 + $0x38] sm:$0xff] %v298
      %315 = vst [vmem:[#allocation8 + $0x40] sm:$0xff] %v299
      %316 = vst [vmem:[#allocation8 + $0x48] sm:$0xff] %v300
      %317 = vst [vmem:[#allocation8 + $0x50] sm:$0xff] %v301
      %318 = vst [vmem:[#allocation8 + $0x58] sm:$0xff] %v302
      %319 = vst [vmem:[#allocation8 + $0x60] sm:$0xff] %v303
      %320 = vst [vmem:[#allocation8 + $0x68] sm:$0xff] %v304
      %321 = vst [vmem:[#allocation8 + $0x70] sm:$0xff] %v305
      %322 = vst [vmem:[#allocation8 + $0x78] sm:$0xff] %v306
      %v323 = vadd.f32 %v291, %v292
      %v324 = vadd.f32 %v323, %v293
      %v325 = vadd.f32 %v324, %v294
      %v326 = vadd.f32 %v325, %v295
      %v327 = vadd.f32 %v326, %v296
      %v328 = vadd.f32 %v327, %v297
      %v329 = vadd.f32 %v328, %v298
      %v330 = vadd.f32 %v329, %v299
      %v331 = vadd.f32 %v330, %v300
      %v332 = vadd.f32 %v331, %v301
      %v333 = vadd.f32 %v332, %v302
      %v334 = vadd.f32 %v333, %v303
      %v335 = vadd.f32 %v334, %v304
      %v336 = vadd.f32 %v335, %v305
      %v337 = vadd.f32 %v336, %v306
      %v338 = vrot.slane %v337, 4
      %v339 = vadd.f32 %v337, %v338
      %v340 = vrot.slane %v339, 2
      %v341 = vadd.f32 %v339, %v340
      %v342 = vrot.slane %v341, 1
      %v343 = vadd.f32 %v341, %v342
      %v344 = vmul.f32 %v291, %v291
      %v345 = vmul.f32 %v292, %v292
      %v346 = vmul.f32 %v293, %v293
      %v347 = vmul.f32 %v294, %v294
      %v348 = vmul.f32 %v295, %v295
      %v349 = vmul.f32 %v296, %v296
      %v350 = vmul.f32 %v297, %v297
      %v351 = vmul.f32 %v298, %v298
      %v352 = vmul.f32 %v299, %v299
      %v353 = vmul.f32 %v300, %v300
      %v354 = vmul.f32 %v301, %v301
      %v355 = vmul.f32 %v302, %v302
      %v356 = vmul.f32 %v303, %v303
      %v357 = vmul.f32 %v304, %v304
      %v358 = vmul.f32 %v305, %v305
      %v359 = vmul.f32 %v306, %v306
      %v360 = vadd.f32 %v344, %v345
      %v361 = vadd.f32 %v360, %v346
      %v362 = vadd.f32 %v361, %v347
      %v363 = vadd.f32 %v362, %v348
      %v364 = vadd.f32 %v363, %v349
      %v365 = vadd.f32 %v364, %v350
      %v366 = vadd.f32 %v365, %v351
      %v367 = vadd.f32 %v366, %v352
      %v368 = vadd.f32 %v367, %v353
      %v369 = vadd.f32 %v368, %v354
      %v370 = vadd.f32 %v369, %v355
      %v371 = vadd.f32 %v370, %v356
      %v372 = vadd.f32 %v371, %v357
      %v373 = vadd.f32 %v372, %v358
      %v374 = vadd.f32 %v373, %v359
      %v375 = vrot.slane %v374, 4
      %v376 = vadd.f32 %v374, %v375
      %v377 = vrot.slane %v376, 2
      %v378 = vadd.f32 %v376, %v377
      %v379 = vrot.slane %v378, 1
      %v380 = vadd.f32 %v378, %v379
      %v381 = vlaneseq
      %v382 = vshrl.u32 %v381, 7
      %vm383 = vcmp.eq.s32.totalorder %v382, 0
      %v384 = vsel %vm383, %v343, 0.0
      %vm385 = vcmp.eq.s32.totalorder %v382, 1
      %v386 = vsel %vm385, %v380, 0.0
      %v387 = vadd.f32 %v384, %v386
      %388 = vst [vmem:[#allocation9] sm:$0xff] %v387
    $region25: #{tpu_custom_call.1} parent=1 // pred_fallthru
      _
    // Predicated region
    $region26: #{tpu_custom_call.1} parent=1 // pred_check
      _
    $region27: #{tpu_custom_call.1} parent=1 // pred_check_branch
      %390 = sbr.rel (0) target = $region29
    $region28: #{tpu_custom_call.1} parent=1 // pred_region
      %s392 = ssub.s32 2048, 2048
      %393 = vsyncadd [#allocation5], %s392
      %s394 = sshll.u32 [#allocation8], 4
      %s395 = int_to_ptr.vmem [resolvable:$true] %s394
      %400 = dma.vmem_to_hbm [thread:$0]  %s395, 2048, %s2, [#allocation5], 128, 128, 8
    $region29: #{tpu_custom_call.1} parent=1 // pred_fallthru
      _
    // Predicated region
    $region30: #{tpu_custom_call.1} parent=1 // pred_check
      _
    $region31: #{tpu_custom_call.1} parent=1 // pred_check_branch
      %402 = sbr.rel (0) target = $region33
    $region32: #{tpu_custom_call.1} parent=1 // pred_region
      %s404 = ssub.s32 128, 128
      %405 = vsyncadd [#allocation10], %s404
      %s407 = sshll.u32 [#allocation9], 4
      %s408 = int_to_ptr.vmem [resolvable:$true] %s407
      %410 = dma.vmem_to_hbm [thread:$0]  %s408, 128, %s3, [#allocation10]
    $region33: #{tpu_custom_call.1} parent=1 // pred_fallthru
      _
    // Predicated region
    $region34: #{tpu_custom_call.1} parent=1 // pred_check
      _
    $region35: #{tpu_custom_call.1} parent=1 // pred_check_branch
      %412 = sbr.rel (0) target = $region37
    $region36: #{tpu_custom_call.1} parent=1 // pred_region
      %413 = dma.done [#allocation5], 2048
    $region37: #{tpu_custom_call.1} parent=1 // pred_fallthru
      _
    // Predicated region
    $region38: #{tpu_custom_call.1} parent=1 // pred_check
      _
    $region39: #{tpu_custom_call.1} parent=1 // pred_check_branch
      %415 = sbr.rel (0) target = $region41
    $region40: #{tpu_custom_call.1} parent=1 // pred_region
      %416 = dma.done [#allocation10], 128
    $region41: #{tpu_custom_call.1} parent=1 // pred_fallthru
      _
    %417 = vsyncpa [#allocation4], 1
    %418 = vsyncpa [#allocation7], 1
    %419 = vsyncpa [#allocation5], 1
    %420 = vsyncpa [#allocation10], 1

</llo_original>
